<compile_context>
chip_gen: v5e
topology: v5e:2x2
jax: 0.10.0
libtpu: 0.0.40
codegen_flags: <defaults>
</compile_context>

<pallas_src>
import functools
import math

import jax
import jax.numpy as jnp
import numpy as np
from jax.experimental import pallas as pl
from jax.experimental.pallas import tpu as pltpu

_C1 = 0.01 ** 2
_C2 = 0.03 ** 2


# ----------------------------- host-side helpers ------------------------------
def _gaussian_1d(window_size: int, sigma: float) -> np.ndarray:
    g = np.array(
        [math.exp(-((x - window_size // 2) ** 2) / float(2 * sigma ** 2))
         for x in range(window_size)],
        dtype=np.float64,
    )
    return (g / g.sum()).astype(np.float32)


def _band_matrix(n: int, weights: np.ndarray) -> np.ndarray:
    """B[i, j] = w[j - i + pad] for |j - i| <= pad, else 0.

    B @ x is the 1-D "same"-zero-padded correlation of each column of x with
    `weights` — exactly F.conv2d(padding=pad) along one spatial axis.
    """
    ws = len(weights)
    pad = ws // 2
    B = np.zeros((n, n), dtype=np.float32)
    for k in range(ws):
        off = k - pad
        i0 = max(0, -off)
        i1 = min(n, n - off)
        if i1 > i0:
            idx = np.arange(i0, i1)
            B[idx, idx + off] = weights[k]
    return B


def _vmem_capacity_bytes() -> int:
    """Physical VMEM of the current generation (v5e/v6e: 128 MiB, v7x: 64 MiB)."""
    try:
        return int(pltpu.get_tpu_info().vmem_capacity_bytes)
    except Exception:
        return 64 << 20  # conservative fallback (v7x physical VMEM)


def _vmem_limit_bytes() -> int:
    cap = _vmem_capacity_bytes()
    # >= 32 MiB (the scoped default everywhere) and <= 3/4 of physical VMEM.
    return max(32 << 20, min(cap * 3 // 4, 100 << 20))


def _choose_planes_per_block(P: int, H: int, W: int, in_itemsize: int) -> int:
    """How many (H, W) planes to lane-pack per grid step."""
    budget = _vmem_capacity_bytes() // 2
    feasible = []
    for pb in range(1, P + 1):
        if P % pb:
            continue
        lanes = pb * W
        est = (
            2 * 2 * H * lanes * in_itemsize   # double-buffered x1/x2 input blocks
            + 5 * H * lanes * 4               # stacked-map VMEM scratch
            + 2 * 5 * H * lanes * 4           # matmul results (horizontal + vertical)
            + 8 * H * lanes * 4               # SSIM elementwise temporaries
            + 2 * lanes * lanes * 4           # kron(I_pb, Bh) (assume double-buffered)
            + 2 * (5 * H) * (5 * H) * 4       # kron(I_5,  Bv) (assume double-buffered)
        )
        if est <= budget:
            feasible.append(pb)
    if not feasible:
        return 1
    # Prefer lane-dense packing (pb*W a multiple of 128, >= one full vreg of
    # lanes) with the smallest block-diagonal Bh; otherwise the widest block
    # that fits (bounded so the kron'd Bh stays small).
    dense = [d for d in feasible if (d * W) % 128 == 0 and d * W >= 128]
    if dense:
        return min(dense)
    capped = [d for d in feasible if d * W <= 1024]
    return max(capped) if capped else min(feasible)


# ---------------------------------- kernel ------------------------------------
def _ssim_kernel(bvk_ref, bhk_ref, x1_ref, x2_ref, sum_ref, s_ref, *, h):
    # bvk_ref: (5H, 5H)   = kron(I_5,  Bv)   vertical band matrix (block diag)
    # bhk_ref: (L,  L)    = kron(I_pb, Bh)   horizontal band matrix, L = pb*W
    # x1_ref, x2_ref: (H, L) lane-packed image planes (native dtype)
    # sum_ref: (1, 1) SMEM partial sum of the SSIM map for this grid step
    # s_ref:   (5H, L) f32 VMEM scratch holding the 5 stacked maps
    a = x1_ref[...].astype(jnp.float32)
    b = x2_ref[...].astype(jnp.float32)

    # Stack the 5 maps to blur along sublanes (one big MXU operand).
    s_ref[0 * h:1 * h, :] = a
    s_ref[1 * h:2 * h, :] = b
    s_ref[2 * h:3 * h, :] = a * a
    s_ref[3 * h:4 * h, :] = b * b
    s_ref[4 * h:5 * h, :] = a * b

    # Two matmuls blur all 5 maps of all packed planes at once.
    t = jnp.dot(s_ref[...], bhk_ref[...], preferred_element_type=jnp.float32)
    blurred = jnp.dot(bvk_ref[...], t, preferred_element_type=jnp.float32)

    mu1 = blurred[0 * h:1 * h, :]
    mu2 = blurred[1 * h:2 * h, :]
    x11 = blurred[2 * h:3 * h, :]
    x22 = blurred[3 * h:4 * h, :]
    x12 = blurred[4 * h:5 * h, :]

    mu1_sq = mu1 * mu1
    mu2_sq = mu2 * mu2
    mu1_mu2 = mu1 * mu2
    sigma1_sq = x11 - mu1_sq
    sigma2_sq = x22 - mu2_sq
    sigma12 = x12 - mu1_mu2

    num = (2.0 * mu1_mu2 + _C1) * (2.0 * sigma12 + _C2)
    den = (mu1_sq + mu2_sq + _C1) * (sigma1_sq + sigma2_sq + _C2)
    # Single cross-lane reduction per grid step; exact f32 divide keeps the
    # result within ~1e-5 of the grouped-conv reference.
    sum_ref[0, 0] = jnp.sum(num / den)


# --------------------------------- wrapper -------------------------------------
def ssim_loss(img1, img2, window_size: int = 11):
    """1 - mean(SSIM(img1, img2)), matching SSIM_Loss(reduction='mean')."""
    # Mirrors the PyTorch module's NHWC->NCHW heuristic (last dim == 3).
    if img1.shape[-1] == 3:
        img1 = jnp.transpose(img1, (0, 3, 1, 2))
    if img2.shape[-1] == 3:
        img2 = jnp.transpose(img2, (0, 3, 1, 2))

    N, C, H, W = img1.shape
    P = N * C
    itemsize = jnp.dtype(img1.dtype).itemsize

    pb = _choose_planes_per_block(P, H, W, itemsize)
    if H % 8 != 0:
        # Keep the sublane dim of the input block equal to the full array
        # extent when H is not a multiple of 8 (BlockSpec (8,128) rule).
        pb = P
    G = P // pb
    lanes = pb * W

    # Lane-pack pb planes side by side: (P, H, W) -> (G*H, pb*W).
    def pack(x):
        return (x.reshape(G, pb, H, W)
                 .transpose(0, 2, 1, 3)
                 .reshape(G * H, lanes))

    x1 = pack(img1)
    x2 = pack(img2)

    # Band matrices with "same" zero padding folded in; kron builds the
    # block-diagonal versions that act on the packed layout.
    w1d = _gaussian_1d(window_size, 1.5)
    bh = _band_matrix(W, w1d).T                 # (W, W): right-multiply = horizontal blur
    bv = _band_matrix(H, w1d)                   # (H, H): left-multiply  = vertical blur
    bhk = jnp.asarray(np.kron(np.eye(pb, dtype=np.float32), bh))   # (lanes, lanes)
    bvk = jnp.asarray(np.kron(np.eye(5, dtype=np.float32), bv))    # (5H, 5H)

    flops_per_step = (2 * (5 * H) * lanes * lanes        # horizontal matmul
                      + 2 * (5 * H) * (5 * H) * lanes    # vertical matmul
                      + 24 * H * lanes)                  # elementwise SSIM math
    cost = pl.CostEstimate(
        flops=int(G * flops_per_step),
        transcendentals=0,
        bytes_accessed=int((x1.size + x2.size) * itemsize
                           + (bhk.size + bvk.size) * 4 + G * 4),
    )

    kernel = functools.partial(_ssim_kernel, h=H)
    sums = pl.pallas_call(
        kernel,
        out_shape=jax.ShapeDtypeStruct((G, 1), jnp.float32),
        grid_spec=pltpu.PrefetchScalarGridSpec(
            num_scalar_prefetch=0,
            grid=(G,),
            in_specs=[
                pl.BlockSpec((5 * H, 5 * H), lambda g: (0, 0)),   # kron(I_5,  Bv), constant
                pl.BlockSpec((lanes, lanes), lambda g: (0, 0)),   # kron(I_pb, Bh), constant
                pl.BlockSpec((H, lanes), lambda g: (g, 0)),       # packed img1 planes
                pl.BlockSpec((H, lanes), lambda g: (g, 0)),       # packed img2 planes
            ],
            out_specs=pl.BlockSpec((1, 1), lambda g: (g, 0),
                                   memory_space=pltpu.MemorySpace.SMEM),
            scratch_shapes=[pltpu.VMEM((5 * H, lanes), jnp.float32)],
        ),
        compiler_params=pltpu.CompilerParams(
            dimension_semantics=("parallel",),
            vmem_limit_bytes=_vmem_limit_bytes(),
        ),
        cost_estimate=cost,
    )(bvk, bhk, x1, x2)

    return 1.0 - jnp.sum(sums) / (N * C * H * W)


# ----------------------------- pure-JAX reference -----------------------------
def _ssim_loss_ref(img1, img2, window_size: int = 11):
    if img1.shape[-1] == 3:
        img1 = jnp.transpose(img1, (0, 3, 1, 2))
    if img2.shape[-1] == 3:
        img2 = jnp.transpose(img2, (0, 3, 1, 2))
    img1 = img1.astype(jnp.float32)
    img2 = img2.astype(jnp.float32)
    C = img1.shape[1]
    g = _gaussian_1d(window_size, 1.5)
    w2d = np.outer(g, g).astype(np.float32)
    window = jnp.broadcast_to(w2d[None, None], (C, 1, window_size, window_size))
    pad = window_size // 2

    def conv(x):
        return jax.lax.conv_general_dilated(
            x, window, window_strides=(1, 1),
            padding=[(pad, pad), (pad, pad)],
            dimension_numbers=("NCHW", "OIHW", "NCHW"),
            feature_group_count=C,
            precision=jax.lax.Precision.HIGHEST,
        )

    mu1, mu2 = conv(img1), conv(img2)
    mu1_sq, mu2_sq, mu1_mu2 = mu1 * mu1, mu2 * mu2, mu1 * mu2
    s1 = conv(img1 * img1) - mu1_sq
    s2 = conv(img2 * img2) - mu2_sq
    s12 = conv(img1 * img2) - mu1_mu2
    ssim_map = ((2 * mu1_mu2 + _C1) * (2 * s12 + _C2)) / (
        (mu1_sq + mu2_sq + _C1) * (s1 + s2 + _C2)
    )
    return 1.0 - jnp.mean(ssim_map)


if __name__ == "__main__":
    key = jax.random.PRNGKey(0)
    k1, k2 = jax.random.split(key)
    N, C, H, W = 2, 4, 16, 16
    img1 = jax.random.uniform(k1, (N, C, H, W), dtype=jnp.float32)
    img2 = jax.random.uniform(k2, (N, C, H, W), dtype=jnp.float32)

    loss = jax.jit(ssim_loss)(img1, img2)
    jax.block_until_ready(loss)

    ref = _ssim_loss_ref(img1, img2)
    np.testing.assert_allclose(np.asarray(loss), np.asarray(ref),
                               atol=1e-4, rtol=1e-4)

    print("KERNEL_OK")
</pallas_src>

<mosaic_0001>
module attributes {stable_mosaic.version = 11 : i64} {
  func.func @_ssim_kernel(%arg0: i32, %arg1: memref<80x80xf32, #tpu.memory_space<vmem>>, %arg2: memref<128x128xf32, #tpu.memory_space<vmem>>, %arg3: memref<16x128xf32, #tpu.memory_space<vmem>>, %arg4: memref<16x128xf32, #tpu.memory_space<vmem>>, %arg5: memref<1x1xf32, #tpu.memory_space<smem>>, %arg6: memref<80x128xf32, #tpu.memory_space<vmem>>) attributes {dimension_semantics = [#tpu.dimension_semantics<parallel>], iteration_bounds = array<i64: 1>, scalar_prefetch = 0 : i64, scratch_operands = 1 : i64, tpu.core_type = #tpu.core_type<tc>, window_params = [{pipeline_mode = #tpu.pipeline_mode<synchronous>, transform_indices = @transform_0, window_bounds = array<i64: 80, 80>}, {pipeline_mode = #tpu.pipeline_mode<synchronous>, transform_indices = @transform_1, window_bounds = array<i64: 128, 128>}, {transform_indices = @transform_2, window_bounds = array<i64: 16, 128>}, {transform_indices = @transform_3, window_bounds = array<i64: 16, 128>}, {transform_indices = @transform_4, window_bounds = array<i64: 1, 1>}]} {
    %c0 = arith.constant 0 : index
    %c0_0 = arith.constant 0 : index
    %0 = vector.load %arg3[%c0, %c0_0] : memref<16x128xf32, #tpu.memory_space<vmem>>, vector<16x128xf32>
    %c0_1 = arith.constant 0 : index
    %c0_2 = arith.constant 0 : index
    %1 = vector.load %arg4[%c0_1, %c0_2] : memref<16x128xf32, #tpu.memory_space<vmem>>, vector<16x128xf32>
    %c0_3 = arith.constant 0 : index
    %c0_4 = arith.constant 0 : index
    %2 = vector.load %arg6[%c0_3, %c0_4] : memref<80x128xf32, #tpu.memory_space<vmem>>, vector<16x128xf32>
    tpu.vector_store %arg6[%c0_3, %c0_4], %0 {strides = array<i32>} : memref<80x128xf32, #tpu.memory_space<vmem>>, vector<16x128xf32>,
    %c16 = arith.constant 16 : index
    %c0_5 = arith.constant 0 : index
    %3 = vector.load %arg6[%c16, %c0_5] : memref<80x128xf32, #tpu.memory_space<vmem>>, vector<16x128xf32>
    tpu.vector_store %arg6[%c16, %c0_5], %1 {strides = array<i32>} : memref<80x128xf32, #tpu.memory_space<vmem>>, vector<16x128xf32>,
    %4 = arith.mulf %0, %0 : vector<16x128xf32>
    %c32 = arith.constant 32 : index
    %c0_6 = arith.constant 0 : index
    %5 = vector.load %arg6[%c32, %c0_6] : memref<80x128xf32, #tpu.memory_space<vmem>>, vector<16x128xf32>
    tpu.vector_store %arg6[%c32, %c0_6], %4 {strides = array<i32>} : memref<80x128xf32, #tpu.memory_space<vmem>>, vector<16x128xf32>,
    %6 = arith.mulf %1, %1 : vector<16x128xf32>
    %c48 = arith.constant 48 : index
    %c0_7 = arith.constant 0 : index
    %7 = vector.load %arg6[%c48, %c0_7] : memref<80x128xf32, #tpu.memory_space<vmem>>, vector<16x128xf32>
    tpu.vector_store %arg6[%c48, %c0_7], %6 {strides = array<i32>} : memref<80x128xf32, #tpu.memory_space<vmem>>, vector<16x128xf32>,
    %8 = arith.mulf %0, %1 : vector<16x128xf32>
    %c64 = arith.constant 64 : index
    %c0_8 = arith.constant 0 : index
    %9 = vector.load %arg6[%c64, %c0_8] : memref<80x128xf32, #tpu.memory_space<vmem>>, vector<16x128xf32>
    tpu.vector_store %arg6[%c64, %c0_8], %8 {strides = array<i32>} : memref<80x128xf32, #tpu.memory_space<vmem>>, vector<16x128xf32>,
    %c0_9 = arith.constant 0 : index
    %c0_10 = arith.constant 0 : index
    %10 = vector.load %arg6[%c0_9, %c0_10] : memref<80x128xf32, #tpu.memory_space<vmem>>, vector<80x128xf32>
    %c0_11 = arith.constant 0 : index
    %c0_12 = arith.constant 0 : index
    %11 = vector.load %arg2[%c0_11, %c0_12] : memref<128x128xf32, #tpu.memory_space<vmem>>, vector<128x128xf32>
    %cst = arith.constant dense<0.000000e+00> : vector<80x128xf32>
    %12 = tpu.matmul %10, %11, %cst {dimension_numbers = #tpu.dot_dimension_numbers<[1], [0], [0], [1], [0, 0, 1, 1], [], []>} : vector<80x128xf32>, vector<128x128xf32>, vector<80x128xf32> -> vector<80x128xf32>
    %c0_13 = arith.constant 0 : index
    %c0_14 = arith.constant 0 : index
    %13 = vector.load %arg1[%c0_13, %c0_14] : memref<80x80xf32, #tpu.memory_space<vmem>>, vector<80x80xf32>
    %cst_15 = arith.constant dense<0.000000e+00> : vector<80x128xf32>
    %14 = tpu.matmul %13, %12, %cst_15 {dimension_numbers = #tpu.dot_dimension_numbers<[1], [0], [0], [1], [0, 0, 1, 1], [], []>} : vector<80x80xf32>, vector<80x128xf32>, vector<80x128xf32> -> vector<80x128xf32>
    %15 = vector.extract_strided_slice %14 {offsets = [0, 0], sizes = [16, 128], strides = [1, 1]} : vector<80x128xf32> to vector<16x128xf32>
    %16 = vector.extract_strided_slice %14 {offsets = [16, 0], sizes = [16, 128], strides = [1, 1]} : vector<80x128xf32> to vector<16x128xf32>
    %17 = vector.extract_strided_slice %14 {offsets = [32, 0], sizes = [16, 128], strides = [1, 1]} : vector<80x128xf32> to vector<16x128xf32>
    %18 = vector.extract_strided_slice %14 {offsets = [48, 0], sizes = [16, 128], strides = [1, 1]} : vector<80x128xf32> to vector<16x128xf32>
    %19 = vector.extract_strided_slice %14 {offsets = [64, 0], sizes = [16, 128], strides = [1, 1]} : vector<80x128xf32> to vector<16x128xf32>
    %20 = arith.mulf %15, %15 : vector<16x128xf32>
    %21 = arith.mulf %16, %16 : vector<16x128xf32>
    %22 = arith.mulf %15, %16 : vector<16x128xf32>
    %23 = arith.subf %17, %20 : vector<16x128xf32>
    %24 = arith.subf %18, %21 : vector<16x128xf32>
    %25 = arith.subf %19, %22 : vector<16x128xf32>
    %cst_16 = arith.constant 2.000000e+00 : f32
    %26 = vector.broadcast %cst_16 : f32 to vector<16x128xf32>
    %27 = arith.mulf %26, %22 : vector<16x128xf32>
    %cst_17 = arith.constant 9.99999974E-5 : f32
    %28 = vector.broadcast %cst_17 : f32 to vector<16x128xf32>
    %29 = arith.addf %27, %28 : vector<16x128xf32>
    %cst_18 = arith.constant 2.000000e+00 : f32
    %30 = vector.broadcast %cst_18 : f32 to vector<16x128xf32>
    %31 = arith.mulf %30, %25 : vector<16x128xf32>
    %cst_19 = arith.constant 8.99999984E-4 : f32
    %32 = vector.broadcast %cst_19 : f32 to vector<16x128xf32>
    %33 = arith.addf %31, %32 : vector<16x128xf32>
    %34 = arith.mulf %29, %33 : vector<16x128xf32>
    %35 = arith.addf %20, %21 : vector<16x128xf32>
    %cst_20 = arith.constant 9.99999974E-5 : f32
    %36 = vector.broadcast %cst_20 : f32 to vector<16x128xf32>
    %37 = arith.addf %35, %36 : vector<16x128xf32>
    %38 = arith.addf %23, %24 : vector<16x128xf32>
    %cst_21 = arith.constant 8.99999984E-4 : f32
    %39 = vector.broadcast %cst_21 : f32 to vector<16x128xf32>
    %40 = arith.addf %38, %39 : vector<16x128xf32>
    %41 = arith.mulf %37, %40 : vector<16x128xf32>
    %42 = arith.divf %34, %41 : vector<16x128xf32>
    %43 = vector.shape_cast %42 : vector<16x128xf32> to vector<1x16x128xf32>
    %cst_22 = arith.constant dense<0.000000e+00> : vector<1xf32>
    %44 = vector.multi_reduction <add>, %43, %cst_22 [1, 2] : vector<1x16x128xf32> to vector<1xf32>
    %45 = vector.shape_cast %44 : vector<1xf32> to vector<1x1x1xf32>
    %46 = vector.extract %45[0, 0, 0] : f32 from vector<1x1x1xf32>
    %c0_23 = arith.constant 0 : index
    %c0_24 = arith.constant 0 : index
    %47 = memref.load %arg5[%c0_23, %c0_24] : memref<1x1xf32, #tpu.memory_space<smem>>
    memref.store %46, %arg5[%c0_23, %c0_24] : memref<1x1xf32, #tpu.memory_space<smem>>
    return
  }
  func.func @transform_0(%arg0: i32) -> (i32, i32) {
    %c0_i32 = arith.constant 0 : i32
    %c0_i32_0 = arith.constant 0 : i32
    %c0_i32_1 = arith.constant 0 : i32
    return %c0_i32, %c0_i32_0 : i32, i32
  }
  func.func @transform_1(%arg0: i32) -> (i32, i32) {
    %c0_i32 = arith.constant 0 : i32
    %c0_i32_0 = arith.constant 0 : i32
    %c0_i32_1 = arith.constant 0 : i32
    return %c0_i32, %c0_i32_0 : i32, i32
  }
  func.func @transform_2(%arg0: i32) -> (i32, i32) {
    %c0_i32 = arith.constant 0 : i32
    %c0_i32_0 = arith.constant 0 : i32
    return %arg0, %c0_i32 : i32, i32
  }
  func.func @transform_3(%arg0: i32) -> (i32, i32) {
    %c0_i32 = arith.constant 0 : i32
    %c0_i32_0 = arith.constant 0 : i32
    return %arg0, %c0_i32 : i32, i32
  }
  func.func @transform_4(%arg0: i32) -> (i32, i32) {
    %c0_i32 = arith.constant 0 : i32
    %c0_i32_0 = arith.constant 0 : i32
    return %arg0, %c0_i32 : i32, i32
  }
}

</mosaic_0001>

<llo_original>
// kernel: ssim_loss.1
$region0: #{ssim_loss.1}
  #allocation0 [shape = 'u32[]', space=smem, size = 0x4, offset = 0x4, fixed_abs, tag = 'smem constant byte address 0x4 - core index']
  #allocation1 [shape = 'u32[72,128]{1,0:T(1,128)}', space=vmem, size = 0x9000, scoped, tag = 'internal scratch']
  #allocation2 [shape = 'f32[80,128]{1,0:T(8,128)}', space=vmem, size = 0xa000, scoped, tag = 'scratch operand']
  %s0 = inlined_call_operand.vmem [shape: f32[80,80], index: 0, kind: input, shape index: {}]
  %s1 = inlined_call_operand.vmem [shape: f32[128,128], index: 1, kind: input, shape index: {}]
  %s2 = inlined_call_operand.vmem [shape: f32[16,128], index: 2, kind: input, shape index: {}]
  %s3 = inlined_call_operand.vmem [shape: f32[16,128], index: 3, kind: input, shape index: {}]
  %s4 = inlined_call_operand.hbm [shape: f32[1,1], index: 4, kind: output, shape index: {}]
  %s5 = sld [smem:[#allocation0]]
  $region26: #{ssim_loss.1} parent=0
    _
  %s7 = ssub.s32 1, %s5
  %s8 = scalar_select 0, %s7, %s5
  $region1: #{ssim_loss.1} parent=0
    #allocation3 [shape = 'u8[512]{0}', space=smem, size = 0x200, scoped, tag = 'output window, operand 0, single buffered']
    #allocation4 [shape = 's32[1]{0}', space=sflag, size = 0x4, scoped, tag = 'scoped memory for ssim_loss.1']
    %9 = vsyncpa [#allocation4], 0
    // Predicated region
    $region2: #{ssim_loss.1} parent=1 // pred_check
      _
    $region3: #{ssim_loss.1} parent=1 // pred_check_branch
      %11 = sbr.rel (0) target = $region5
    $region4: #{ssim_loss.1} parent=1 // pred_region
      _
    $region5: #{ssim_loss.1} parent=1 // pred_fallthru
      _
    // Predicated region
    $region6: #{ssim_loss.1} parent=1 // pred_check
      _
    $region7: #{ssim_loss.1} parent=1 // pred_check_branch
      %13 = sbr.rel (0) target = $region9
    $region8: #{ssim_loss.1} parent=1 // pred_region
      _
    $region9: #{ssim_loss.1} parent=1 // pred_fallthru
      _
    // Predicated region
    $region10: #{ssim_loss.1} parent=1 // pred_check
      _
    $region11: #{ssim_loss.1} parent=1 // pred_check_branch
      %15 = sbr.rel (0) target = $region13
    $region12: #{ssim_loss.1} parent=1 // pred_region
      _
    $region13: #{ssim_loss.1} parent=1 // pred_fallthru
      _
    // Predicated region
    $region14: #{ssim_loss.1} parent=1 // pred_check
      _
    $region15: #{ssim_loss.1} parent=1 // pred_check_branch
      %17 = sbr.rel (0) target = $region17
    $region16: #{ssim_loss.1} parent=1 // pred_region
      _
    $region17: #{ssim_loss.1} parent=1 // pred_fallthru
      _
    %v18 = vld [vmem:[%s2] sm:$0xff]
    %v19 = vld [vmem:[%s2 + $0x8] sm:$0xff]
    %v20 = vld [vmem:[%s3] sm:$0xff]
    %v21 = vld [vmem:[%s3 + $0x8] sm:$0xff]
    %22 = vst [vmem:[#allocation2] sm:$0xff] %v18
    %23 = vst [vmem:[#allocation2 + $0x8] sm:$0xff] %v19
    %24 = vst [vmem:[#allocation2 + $0x10] sm:$0xff] %v20
    %25 = vst [vmem:[#allocation2 + $0x18] sm:$0xff] %v21
    %v26 = vmul.f32 %v18, %v18
    %v27 = vmul.f32 %v19, %v19
    %28 = vst [vmem:[#allocation2 + $0x20] sm:$0xff] %v26
    %29 = vst [vmem:[#allocation2 + $0x28] sm:$0xff] %v27
    %v30 = vmul.f32 %v20, %v20
    %v31 = vmul.f32 %v21, %v21
    %32 = vst [vmem:[#allocation2 + $0x30] sm:$0xff] %v30
    %33 = vst [vmem:[#allocation2 + $0x38] sm:$0xff] %v31
    %v34 = vmul.f32 %v18, %v20
    %v35 = vmul.f32 %v19, %v21
    %36 = vst [vmem:[#allocation2 + $0x40] sm:$0xff] %v34
    %37 = vst [vmem:[#allocation2 + $0x48] sm:$0xff] %v35
    %v38 = vld [vmem:[#allocation2] sm:$0xff]
    %v39 = vld [vmem:[#allocation2 + $0x8] sm:$0xff]
    %v40 = vld [vmem:[#allocation2 + $0x10] sm:$0xff]
    %v41 = vld [vmem:[#allocation2 + $0x18] sm:$0xff]
    %v42 = vld [vmem:[#allocation2 + $0x20] sm:$0xff]
    %v43 = vld [vmem:[#allocation2 + $0x28] sm:$0xff]
    %v44 = vld [vmem:[#allocation2 + $0x30] sm:$0xff]
    %v45 = vld [vmem:[#allocation2 + $0x38] sm:$0xff]
    %v46 = vld [vmem:[#allocation2 + $0x40] sm:$0xff]
    %v47 = vld [vmem:[#allocation2 + $0x48] sm:$0xff]
    %v48 = vld [vmem:[%s1] sm:$0xff]
    %v49 = vld [vmem:[%s1 + $0x8] sm:$0xff]
    %v50 = vld [vmem:[%s1 + $0x10] sm:$0xff]
    %v51 = vld [vmem:[%s1 + $0x18] sm:$0xff]
    %v52 = vld [vmem:[%s1 + $0x20] sm:$0xff]
    %v53 = vld [vmem:[%s1 + $0x28] sm:$0xff]
    %v54 = vld [vmem:[%s1 + $0x30] sm:$0xff]
    %v55 = vld [vmem:[%s1 + $0x38] sm:$0xff]
    %v56 = vld [vmem:[%s1 + $0x40] sm:$0xff]
    %v57 = vld [vmem:[%s1 + $0x48] sm:$0xff]
    %v58 = vld [vmem:[%s1 + $0x50] sm:$0xff]
    %v59 = vld [vmem:[%s1 + $0x58] sm:$0xff]
    %v60 = vld [vmem:[%s1 + $0x60] sm:$0xff]
    %v61 = vld [vmem:[%s1 + $0x68] sm:$0xff]
    %v62 = vld [vmem:[%s1 + $0x70] sm:$0xff]
    %v63 = vld [vmem:[%s1 + $0x78] sm:$0xff]
    %64 = vmatpush.msra.mxu0 %v63
    %65 = vmatpush.msra.mxu0 %v62
    %66 = vmatpush.msra.mxu0 %v61
    %67 = vmatpush.msra.mxu0 %v60
    %68 = vmatpush.msra.mxu0 %v59
    %69 = vmatpush.msra.mxu0 %v58
    %70 = vmatpush.msra.mxu0 %v57
    %71 = vmatpush.msra.mxu0 %v56
    %72 = vmatpush.msra.mxu0 %v55
    %73 = vmatpush.msra.mxu0 %v54
    %74 = vmatpush.msra.mxu0 %v53
    %75 = vmatpush.msra.mxu0 %v52
    %76 = vmatpush.msra.mxu0 %v51
    %77 = vmatpush.msra.mxu0 %v50
    %78 = vmatpush.msra.mxu0 %v49
    %79 = vmatpush.msra.mxu0 %v48
    %80 = vmatmul.f32.gmra.mxu0 %v38
    %v81 = vpop.f32.mrf.mxu0
    %v82 = vadd.f32 0.0, %v81
    %83 = vmatmul.f32.gmra.mxu0 %v39
    %v84 = vpop.f32.mrf.mxu0
    %v85 = vadd.f32 0.0, %v84
    %86 = vmatmul.f32.gmra.mxu0 %v40
    %v87 = vpop.f32.mrf.mxu0
    %v88 = vadd.f32 0.0, %v87
    %89 = vmatmul.f32.gmra.mxu0 %v41
    %v90 = vpop.f32.mrf.mxu0
    %v91 = vadd.f32 0.0, %v90
    %92 = vmatmul.f32.gmra.mxu0 %v42
    %v93 = vpop.f32.mrf.mxu0
    %v94 = vadd.f32 0.0, %v93
    %95 = vmatmul.f32.gmra.mxu0 %v43
    %v96 = vpop.f32.mrf.mxu0
    %v97 = vadd.f32 0.0, %v96
    %98 = vmatmul.f32.gmra.mxu0 %v44
    %v99 = vpop.f32.mrf.mxu0
    %v100 = vadd.f32 0.0, %v99
    %101 = vmatmul.f32.gmra.mxu0 %v45
    %v102 = vpop.f32.mrf.mxu0
    %v103 = vadd.f32 0.0, %v102
    %104 = vmatmul.f32.gmra.mxu0 %v46
    %v105 = vpop.f32.mrf.mxu0
    %v106 = vadd.f32 0.0, %v105
    %107 = vmatmul.f32.gmra.mxu0 %v47
    %v108 = vpop.f32.mrf.mxu0
    %v109 = vadd.f32 0.0, %v108
    %110 = vdwg.mxu0
    %v111 = vld [vmem:[%s0] sm:$0xff]
    %v112 = vld [vmem:[%s0 + $0x8] sm:$0xff]
    %v113 = vld [vmem:[%s0 + $0x10] sm:$0xff]
    %v114 = vld [vmem:[%s0 + $0x18] sm:$0xff]
    %v115 = vld [vmem:[%s0 + $0x20] sm:$0xff]
    %v116 = vld [vmem:[%s0 + $0x28] sm:$0xff]
    %v117 = vld [vmem:[%s0 + $0x30] sm:$0xff]
    %v118 = vld [vmem:[%s0 + $0x38] sm:$0xff]
    %v119 = vld [vmem:[%s0 + $0x40] sm:$0xff]
    %v120 = vld [vmem:[%s0 + $0x48] sm:$0xff]
    %vm121 = vcmask 654336
    %v123 = vsel %vm121, %v111, 0
    %v126 = vsel %vm121, %v112, 0
    %v129 = vsel %vm121, %v113, 0
    %v132 = vsel %vm121, %v114, 0
    %v135 = vsel %vm121, %v115, 0
    %v138 = vsel %vm121, %v116, 0
    %v141 = vsel %vm121, %v117, 0
    %v144 = vsel %vm121, %v118, 0
    %v147 = vsel %vm121, %v119, 0
    %v150 = vsel %vm121, %v120, 0
    %152 = vmatpush.msra.mxu0 0.0
    %153 = vmatpush.msra.mxu0 0.0
    %154 = vmatpush.msra.mxu0 0.0
    %155 = vmatpush.msra.mxu0 0.0
    %156 = vmatpush.msra.mxu0 0.0
    %157 = vmatpush.msra.mxu0 0.0
    %158 = vmatpush.msra.mxu0 %v109
    %159 = vmatpush.msra.mxu0 %v106
    %160 = vmatpush.msra.mxu0 %v103
    %161 = vmatpush.msra.mxu0 %v100
    %162 = vmatpush.msra.mxu0 %v97
    %163 = vmatpush.msra.mxu0 %v94
    %164 = vmatpush.msra.mxu0 %v91
    %165 = vmatpush.msra.mxu0 %v88
    %166 = vmatpush.msra.mxu0 %v85
    %167 = vmatpush.msra.mxu0 %v82
    %168 = vmatmul.f32.gmra.mxu0 %v123
    %v169 = vpop.f32.mrf.mxu0
    %v170 = vadd.f32 0.0, %v169
    %171 = vmatmul.f32.gmra.mxu0 %v126
    %v172 = vpop.f32.mrf.mxu0
    %v173 = vadd.f32 0.0, %v172
    %174 = vmatmul.f32.gmra.mxu0 %v129
    %v175 = vpop.f32.mrf.mxu0
    %v176 = vadd.f32 0.0, %v175
    %177 = vmatmul.f32.gmra.mxu0 %v132
    %v178 = vpop.f32.mrf.mxu0
    %v179 = vadd.f32 0.0, %v178
    %180 = vmatmul.f32.gmra.mxu0 %v135
    %v181 = vpop.f32.mrf.mxu0
    %v182 = vadd.f32 0.0, %v181
    %183 = vmatmul.f32.gmra.mxu0 %v138
    %v184 = vpop.f32.mrf.mxu0
    %v185 = vadd.f32 0.0, %v184
    %186 = vmatmul.f32.gmra.mxu0 %v141
    %v187 = vpop.f32.mrf.mxu0
    %v188 = vadd.f32 0.0, %v187
    %189 = vmatmul.f32.gmra.mxu0 %v144
    %v190 = vpop.f32.mrf.mxu0
    %v191 = vadd.f32 0.0, %v190
    %192 = vmatmul.f32.gmra.mxu0 %v147
    %v193 = vpop.f32.mrf.mxu0
    %v194 = vadd.f32 0.0, %v193
    %195 = vmatmul.f32.gmra.mxu0 %v150
    %v196 = vpop.f32.mrf.mxu0
    %v197 = vadd.f32 0.0, %v196
    %198 = vdwg.mxu0
    %v199 = vmul.f32 %v170, %v170
    %v200 = vmul.f32 %v173, %v173
    %v201 = vmul.f32 %v176, %v176
    %v202 = vmul.f32 %v179, %v179
    %v203 = vmul.f32 %v170, %v176
    %v204 = vmul.f32 %v173, %v179
    %v205 = vsub.f32 %v182, %v199
    %v206 = vsub.f32 %v185, %v200
    %v207 = vsub.f32 %v188, %v201
    %v208 = vsub.f32 %v191, %v202
    %v209 = vsub.f32 %v194, %v203
    %v210 = vsub.f32 %v197, %v204
    %v211 = vmul.f32 %v203, 2.0
    %v212 = vmul.f32 %v204, 2.0
    %v213 = vadd.f32 %v211, 0.0001
    %v214 = vadd.f32 %v212, 0.0001
    %v215 = vmul.f32 %v209, 2.0
    %v216 = vmul.f32 %v210, 2.0
    %v217 = vadd.f32 %v215, 0.0009
    %v218 = vadd.f32 %v216, 0.0009
    %v219 = vmul.f32 %v213, %v217
    %v220 = vmul.f32 %v214, %v218
    %v221 = vadd.f32 %v199, %v201
    %v222 = vadd.f32 %v200, %v202
    %v223 = vadd.f32 %v221, 0.0001
    %v224 = vadd.f32 %v222, 0.0001
    %v225 = vadd.f32 %v205, %v207
    %v226 = vadd.f32 %v206, %v208
    %v227 = vadd.f32 %v225, 0.0009
    %v228 = vadd.f32 %v226, 0.0009
    %v229 = vmul.f32 %v223, %v227
    %v230 = vmul.f32 %v224, %v228
    %v231 = vrcp.pop %v229
    %v232 = vmul.f32 %v229, %v231
    %v233 = vsub.f32 1.0, %v232
    %v234 = vmul.f32 %v231, %v233
    %v235 = vadd.f32 %v231, %v234
    %vm236 = vweird.f32 %v229
    %vm237 = vweird.f32 %v231
    %vm238 = vmor %vm236, %vm237
    %v239 = vsel %vm238, %v231, %v235
    %v240 = vand.u32 2147483647, %v229
    %vm241 = vcmp.eq.f32.partialorder %v240, 8.507059e+37
    %v242 = vand.u32 %v229, 2147483648
    %v243 = vor.u32 1.1754944e-38, %v242
    %v244 = vsel %vm241, %v243, %v239
    %v245 = vmul.f32 %v219, %v244
    %v246 = vrcp.pop %v230
    %v247 = vmul.f32 %v230, %v246
    %v248 = vsub.f32 1.0, %v247
    %v249 = vmul.f32 %v246, %v248
    %v250 = vadd.f32 %v246, %v249
    %vm251 = vweird.f32 %v230
    %vm252 = vweird.f32 %v246
    %vm253 = vmor %vm251, %vm252
    %v254 = vsel %vm253, %v246, %v250
    %v255 = vand.u32 2147483647, %v230
    %vm256 = vcmp.eq.f32.partialorder %v255, 8.507059e+37
    %v257 = vand.u32 %v230, 2147483648
    %v258 = vor.u32 1.1754944e-38, %v257
    %v259 = vsel %vm256, %v258, %v254
    %v260 = vmul.f32 %v220, %v259
    %v261 = vadd.f32 %v245, %v260
    %262 = vadd.xlane.f32.xlu0 %v261
    %v263 = vpop.xlane.xlu0 %262
    %v264 = vrot.slane %v263, 4
    %v265 = vadd.f32 %v263, %v264
    %v266 = vrot.slane %v265, 2
    %v267 = vadd.f32 %v265, %v266
    %v268 = vrot.slane %v267, 1
    %v269 = vadd.f32 %v267, %v268
    %s270 = vtos %v269
    %s271 = scalar_lea.smem [#allocation3], 0
    %272 = sst [smem:[%s271]] %s270
    // Predicated region
    $region18: #{ssim_loss.1} parent=1 // pred_check
      _
    $region19: #{ssim_loss.1} parent=1 // pred_check_branch
      %274 = sbr.rel (0) target = $region21
    $region20: #{ssim_loss.1} parent=1 // pred_region
      %276 = vsyncadd [#allocation4], 0
      %s278 = sshll.u32 %s4, 4
      %s279 = int_to_ptr.hbm [resolvable:$true] %s278
      %281 = dma.smem_to_hbm [#allocation3], 16, %s279, [#allocation4]
    $region21: #{ssim_loss.1} parent=1 // pred_fallthru
      _
    // Predicated region
    $region22: #{ssim_loss.1} parent=1 // pred_check
      _
    $region23: #{ssim_loss.1} parent=1 // pred_check_branch
      %283 = sbr.rel (0) target = $region25
    $region24: #{ssim_loss.1} parent=1 // pred_region
      %285 = dma.done [#allocation4], 16
    $region25: #{ssim_loss.1} parent=1 // pred_fallthru
      _
    %286 = sfence
    %287 = vsyncpa [#allocation4], 1

</llo_original>
